<compile_context>
chip_gen: v7x
topology: tpu7x:2x2x1
jax: 0.10.0
libtpu: 0.0.40
codegen_flags: <defaults>
</compile_context>

<pallas_src>
import functools

import jax
import jax.numpy as jnp
from jax.experimental import pallas as pl
from jax.experimental.pallas import tpu as pltpu

WIN_SIZE = 11
WIN_SIGMA = 1.5
DATA_RANGE = 255.0   # SSIM module default
K1, K2 = 0.01, 0.03


def _gauss_1d(size, sigma):
    coords = jnp.arange(size, dtype=jnp.float32) - size // 2
    g = jnp.exp(-(coords ** 2) / (2.0 * sigma ** 2))
    return g / jnp.sum(g)


def _conv_matrices(H, W, win_size, sigma):
    """Separable valid Gaussian conv as matmuls: out = avt @ img @ ah."""
    g = _gauss_1d(win_size, sigma)
    H_out = H - win_size + 1
    W_out = W - win_size + 1
    dw = jnp.arange(W)[:, None] - jnp.arange(W_out)[None, :]          # (W, W_out)
    ah = jnp.where((dw >= 0) & (dw < win_size),
                   g[jnp.clip(dw, 0, win_size - 1)], 0.0)
    dh = jnp.arange(H)[None, :] - jnp.arange(H_out)[:, None]          # (H_out, H)
    avt = jnp.where((dh >= 0) & (dh < win_size),
                    g[jnp.clip(dh, 0, win_size - 1)], 0.0)
    return avt.astype(jnp.float32), ah.astype(jnp.float32)


def _round_up(x, m):
    return (x + m - 1) // m * m


def _choose_p(B, H, W):
    """Largest divisor of B keeping the packed slab narrow enough for VMEM,
    preferring a grid of >= 2 steps so both v7x TensorCores get work."""
    def fits(p):
        if p * W > 1024:                         # <= 8 vregs wide packed rows
            return False
        approx = (2 * 2 + 8) * H * p * W * 4     # x/y double-buffered + slabs
        return approx <= 20 * 1024 * 1024
    divs = [p for p in range(1, B + 1) if B % p == 0 and fits(p)]
    if not divs:
        return 1
    pref = [p for p in divs if B // p >= 2]
    return max(pref) if pref else max(divs)


def _ssim_block_kernel(x_ref, y_ref, ahb_ref, avt5_ref, seg_ref, out_ref, *,
                       c1, c2, ho, hop, inv_area):
    x = x_ref[...].astype(jnp.float32)           # (H, P*W)
    y = y_ref[...].astype(jnp.float32)

    # Fuse the five Gaussian filters into two matmuls over a stacked slab.
    slab = jnp.concatenate([x, y, x * x, y * y, x * y], axis=0)       # (5H, P*W)
    t = jnp.dot(slab, ahb_ref[...],
                preferred_element_type=jnp.float32)                   # (5H, P*Wo)
    f = jnp.dot(avt5_ref[...], t,
                preferred_element_type=jnp.float32)                   # (5*Hop, P*Wo)

    mu1 = f[0 * hop:0 * hop + ho]
    mu2 = f[1 * hop:1 * hop + ho]
    e_x2 = f[2 * hop:2 * hop + ho]
    e_y2 = f[3 * hop:3 * hop + ho]
    e_xy = f[4 * hop:4 * hop + ho]

    mu1_sq = mu1 * mu1
    mu2_sq = mu2 * mu2
    mu1_mu2 = mu1 * mu2
    sigma1_sq = e_x2 - mu1_sq
    sigma2_sq = e_y2 - mu2_sq
    sigma12 = e_xy - mu1_mu2

    num = (2.0 * mu1_mu2 + c1) * (2.0 * sigma12 + c2)
    den = (mu1_sq + mu2_sq + c1) * (sigma1_sq + sigma2_sq + c2)
    ssim_map = num * pl.reciprocal(den, approx=True)                  # (Ho, P*Wo)

    # Per-plane mean: sublane sum, then segmented lane sum via a ones matmul.
    col = jnp.sum(ssim_map, axis=0, keepdims=True)                    # (1, P*Wo)
    out_ref[...] = jnp.dot(col, seg_ref[...],
                           preferred_element_type=jnp.float32) * inv_area   # (1, P)


def ssim_pallas(X, Y, win_size=WIN_SIZE, win_sigma=WIN_SIGMA,
                data_range=DATA_RANGE, size_average=True):
    N, C, H, W = X.shape
    B = N * C
    Ho = H - win_size + 1
    Wo = W - win_size + 1
    Hop = _round_up(Ho, 8)          # pad each filtered block to a sublane mult.
    c1 = (K1 * data_range) ** 2
    c2 = (K2 * data_range) ** 2

    P = _choose_p(B, H, W)
    G = B // P

    avt, ah = _conv_matrices(H, W, win_size, win_sigma)
    # Block-diagonal horizontal filter for P lane-packed planes.
    ahb = jnp.kron(jnp.eye(P, dtype=jnp.float32), ah)                 # (P*W, P*Wo)
    # 5-block (row-padded) vertical filter for the stacked slab.
    avt5 = jnp.zeros((5 * Hop, 5 * H), jnp.float32)
    for q in range(5):
        avt5 = avt5.at[q * Hop:q * Hop + Ho, q * H:(q + 1) * H].set(avt)
    # Segmented lane-sum matrix: plane p <- lanes [p*Wo, (p+1)*Wo).
    seg = jnp.kron(jnp.eye(P, dtype=jnp.float32),
                   jnp.ones((Wo, 1), jnp.float32))                    # (P*Wo, P)

    # Lane-pack P planes per grid step: (G, H, P*W).  Original dtype is
    # preserved (no wrapper f32 cast); this is layout plumbing only.
    def pack(a):
        return a.reshape(G, P, H, W).transpose(0, 2, 1, 3).reshape(G, H, P * W)

    Xp, Yp = pack(X), pack(Y)

    kernel = functools.partial(_ssim_block_kernel, c1=c1, c2=c2,
                               ho=Ho, hop=Hop, inv_area=1.0 / (Ho * Wo))

    # Note: the constant-matrix inputs have constant index_maps, so they are
    # fetched once and not re-DMA'd across grid steps; at these sizes their
    # double-buffer footprint is negligible.
    per_plane = pl.pallas_call(
        kernel,
        out_shape=jax.ShapeDtypeStruct((G, 1, P), jnp.float32),
        grid_spec=pltpu.PrefetchScalarGridSpec(
            num_scalar_prefetch=0,
            grid=(G,),
            in_specs=[
                pl.BlockSpec((None, H, P * W), lambda g: (g, 0, 0)),
                pl.BlockSpec((None, H, P * W), lambda g: (g, 0, 0)),
                pl.BlockSpec((P * W, P * Wo), lambda g: (0, 0)),
                pl.BlockSpec((5 * Hop, 5 * H), lambda g: (0, 0)),
                pl.BlockSpec((P * Wo, P), lambda g: (0, 0)),
            ],
            out_specs=pl.BlockSpec((None, 1, P), lambda g: (g, 0, 0)),
        ),
        compiler_params=pltpu.CompilerParams(
            dimension_semantics=("parallel",),
            vmem_limit_bytes=32 * 1024 * 1024,
        ),
    )(Xp, Yp, ahb, avt5, seg)

    # (G, 1, P) -> per plane, plane b = g*P + p corresponds to (n, c) = divmod(b, C)
    per_plane = per_plane.reshape(N, C)
    # matches: ssim_map.mean(-1).mean(-1).mean(-1) per batch, then .mean()
    ssim_val = per_plane.mean(axis=1)
    if size_average:
        ssim_val = ssim_val.mean()
    return ssim_val


def _ssim_reference(X, Y, win_size=WIN_SIZE, win_sigma=WIN_SIGMA,
                    data_range=DATA_RANGE):
    """Plain-JAX reference (exact division) for correctness checking."""
    N, C, H, W = X.shape
    c1 = (K1 * data_range) ** 2
    c2 = (K2 * data_range) ** 2
    avt, ah = _conv_matrices(H, W, win_size, win_sigma)

    def gf(img):
        return jnp.einsum('oh,nchw,wp->ncop', avt, img.astype(jnp.float32), ah)

    mu1, mu2 = gf(X), gf(Y)
    s1 = gf(X * X) - mu1 ** 2
    s2 = gf(Y * Y) - mu2 ** 2
    s12 = gf(X * Y) - mu1 * mu2
    cs_map = (2 * s12 + c2) / (s1 + s2 + c2)
    ssim_map = (2 * mu1 * mu2 + c1) / (mu1 ** 2 + mu2 ** 2 + c1) * cs_map
    return ssim_map.mean(-1).mean(-1).mean(-1).mean()


if __name__ == "__main__":
    # SSIM() defaults: win_size=11, win_sigma=1.5, data_range=255, channel=3
    N, C, H, W = 2, 3, 16, 16
    key = jax.random.PRNGKey(0)
    kx, ky = jax.random.split(key)
    X = jax.random.uniform(kx, (N, C, H, W), dtype=jnp.float32) * DATA_RANGE
    Y = jax.random.uniform(ky, (N, C, H, W), dtype=jnp.float32) * DATA_RANGE

    out = ssim_pallas(X, Y)
    out = jax.block_until_ready(out)

    ref = _ssim_reference(X, Y)
    assert jnp.allclose(out, ref, rtol=1e-2, atol=1e-3), (out, ref)

    print("KERNEL_OK")
</pallas_src>

<mosaic_0001>
module attributes {stable_mosaic.version = 11 : i64} {
  func.func @_ssim_block_kernel(%arg0: i32, %arg1: memref<1x16x48xf32, #tpu.memory_space<vmem>>, %arg2: memref<1x16x48xf32, #tpu.memory_space<vmem>>, %arg3: memref<48x18xf32, #tpu.memory_space<vmem>>, %arg4: memref<40x80xf32, #tpu.memory_space<vmem>>, %arg5: memref<18x3xf32, #tpu.memory_space<vmem>>, %arg6: memref<1x1x3xf32, #tpu.memory_space<vmem>>) attributes {dimension_semantics = [#tpu.dimension_semantics<parallel>], iteration_bounds = array<i64: 2>, scalar_prefetch = 0 : i64, scratch_operands = 0 : i64, tpu.core_type = #tpu.core_type<tc>, window_params = [{transform_indices = @transform_0, window_bounds = array<i64: 1, 16, 48>}, {transform_indices = @transform_1, window_bounds = array<i64: 1, 16, 48>}, {pipeline_mode = #tpu.pipeline_mode<synchronous>, transform_indices = @transform_2, window_bounds = array<i64: 48, 18>}, {pipeline_mode = #tpu.pipeline_mode<synchronous>, transform_indices = @transform_3, window_bounds = array<i64: 40, 80>}, {pipeline_mode = #tpu.pipeline_mode<synchronous>, transform_indices = @transform_4, window_bounds = array<i64: 18, 3>}, {transform_indices = @transform_5, window_bounds = array<i64: 1, 1, 3>}]} {
    %c0 = arith.constant 0 : index
    %c0_0 = arith.constant 0 : index
    %c0_1 = arith.constant 0 : index
    %0 = vector.load %arg1[%c0, %c0_0, %c0_1] : memref<1x16x48xf32, #tpu.memory_space<vmem>>, vector<1x16x48xf32>
    %1 = vector.shape_cast %0 : vector<1x16x48xf32> to vector<16x48xf32>
    %c0_2 = arith.constant 0 : index
    %c0_3 = arith.constant 0 : index
    %c0_4 = arith.constant 0 : index
    %2 = vector.load %arg2[%c0_2, %c0_3, %c0_4] : memref<1x16x48xf32, #tpu.memory_space<vmem>>, vector<1x16x48xf32>
    %3 = vector.shape_cast %2 : vector<1x16x48xf32> to vector<16x48xf32>
    %4 = arith.mulf %1, %1 : vector<16x48xf32>
    %5 = arith.mulf %3, %3 : vector<16x48xf32>
    %6 = arith.mulf %1, %3 : vector<16x48xf32>
    %7 = tpu.concatenate %1, %3, %4, %5, %6 in 0 : vector<16x48xf32>, vector<16x48xf32>, vector<16x48xf32>, vector<16x48xf32>, vector<16x48xf32> -> vector<80x48xf32>
    %c0_5 = arith.constant 0 : index
    %c0_6 = arith.constant 0 : index
    %8 = vector.load %arg3[%c0_5, %c0_6] : memref<48x18xf32, #tpu.memory_space<vmem>>, vector<48x18xf32>
    %cst = arith.constant dense<0.000000e+00> : vector<80x18xf32>
    %9 = tpu.matmul %7, %8, %cst {dimension_numbers = #tpu.dot_dimension_numbers<[1], [0], [0], [1], [0, 0, 1, 1], [], []>} : vector<80x48xf32>, vector<48x18xf32>, vector<80x18xf32> -> vector<80x18xf32>
    %c0_7 = arith.constant 0 : index
    %c0_8 = arith.constant 0 : index
    %10 = vector.load %arg4[%c0_7, %c0_8] : memref<40x80xf32, #tpu.memory_space<vmem>>, vector<40x80xf32>
    %cst_9 = arith.constant dense<0.000000e+00> : vector<40x18xf32>
    %11 = tpu.matmul %10, %9, %cst_9 {dimension_numbers = #tpu.dot_dimension_numbers<[1], [0], [0], [1], [0, 0, 1, 1], [], []>} : vector<40x80xf32>, vector<80x18xf32>, vector<40x18xf32> -> vector<40x18xf32>
    %12 = vector.extract_strided_slice %11 {offsets = [0, 0], sizes = [6, 18], strides = [1, 1]} : vector<40x18xf32> to vector<6x18xf32>
    %13 = vector.extract_strided_slice %11 {offsets = [8, 0], sizes = [6, 18], strides = [1, 1]} : vector<40x18xf32> to vector<6x18xf32>
    %14 = vector.extract_strided_slice %11 {offsets = [16, 0], sizes = [6, 18], strides = [1, 1]} : vector<40x18xf32> to vector<6x18xf32>
    %15 = vector.extract_strided_slice %11 {offsets = [24, 0], sizes = [6, 18], strides = [1, 1]} : vector<40x18xf32> to vector<6x18xf32>
    %16 = vector.extract_strided_slice %11 {offsets = [32, 0], sizes = [6, 18], strides = [1, 1]} : vector<40x18xf32> to vector<6x18xf32>
    %17 = arith.mulf %12, %12 : vector<6x18xf32>
    %18 = arith.mulf %13, %13 : vector<6x18xf32>
    %19 = arith.mulf %12, %13 : vector<6x18xf32>
    %20 = arith.subf %14, %17 : vector<6x18xf32>
    %21 = arith.subf %15, %18 : vector<6x18xf32>
    %22 = arith.subf %16, %19 : vector<6x18xf32>
    %cst_10 = arith.constant 2.000000e+00 : f32
    %23 = vector.broadcast %cst_10 : f32 to vector<6x18xf32>
    %24 = arith.mulf %23, %19 : vector<6x18xf32>
    %cst_11 = arith.constant 6.502500e+00 : f32
    %25 = vector.broadcast %cst_11 : f32 to vector<6x18xf32>
    %26 = arith.addf %24, %25 : vector<6x18xf32>
    %cst_12 = arith.constant 2.000000e+00 : f32
    %27 = vector.broadcast %cst_12 : f32 to vector<6x18xf32>
    %28 = arith.mulf %27, %22 : vector<6x18xf32>
    %cst_13 = arith.constant 5.852250e+01 : f32
    %29 = vector.broadcast %cst_13 : f32 to vector<6x18xf32>
    %30 = arith.addf %28, %29 : vector<6x18xf32>
    %31 = arith.mulf %26, %30 : vector<6x18xf32>
    %32 = arith.addf %17, %18 : vector<6x18xf32>
    %cst_14 = arith.constant 6.502500e+00 : f32
    %33 = vector.broadcast %cst_14 : f32 to vector<6x18xf32>
    %34 = arith.addf %32, %33 : vector<6x18xf32>
    %35 = arith.addf %20, %21 : vector<6x18xf32>
    %cst_15 = arith.constant 5.852250e+01 : f32
    %36 = vector.broadcast %cst_15 : f32 to vector<6x18xf32>
    %37 = arith.addf %35, %36 : vector<6x18xf32>
    %38 = arith.mulf %34, %37 : vector<6x18xf32>
    %39 = tpu.reciprocal %38 {approx = true} : vector<6x18xf32> -> vector<6x18xf32>
    %40 = arith.mulf %31, %39 : vector<6x18xf32>
    %cst_16 = arith.constant dense<0.000000e+00> : vector<18xf32>
    %41 = vector.multi_reduction <add>, %40, %cst_16 [0] : vector<6x18xf32> to vector<18xf32>
    %42 = vector.shape_cast %41 : vector<18xf32> to vector<1x18xf32>
    %c0_17 = arith.constant 0 : index
    %c0_18 = arith.constant 0 : index
    %43 = vector.load %arg5[%c0_17, %c0_18] : memref<18x3xf32, #tpu.memory_space<vmem>>, vector<18x3xf32>
    %cst_19 = arith.constant dense<0.000000e+00> : vector<1x3xf32>
    %44 = tpu.matmul %42, %43, %cst_19 {dimension_numbers = #tpu.dot_dimension_numbers<[1], [0], [0], [1], [0, 0, 1, 1], [], []>} : vector<1x18xf32>, vector<18x3xf32>, vector<1x3xf32> -> vector<1x3xf32>
    %cst_20 = arith.constant 0.027777778 : f32
    %45 = vector.broadcast %cst_20 : f32 to vector<1x3xf32>
    %46 = arith.mulf %44, %45 : vector<1x3xf32>
    %c0_21 = arith.constant 0 : index
    %c0_22 = arith.constant 0 : index
    %c0_23 = arith.constant 0 : index
    %47 = vector.load %arg6[%c0_21, %c0_22, %c0_23] : memref<1x1x3xf32, #tpu.memory_space<vmem>>, vector<1x1x3xf32>
    %48 = vector.shape_cast %47 : vector<1x1x3xf32> to vector<1x3xf32>
    %49 = vector.shape_cast %46 : vector<1x3xf32> to vector<1x1x3xf32>
    tpu.vector_store %arg6[%c0_21, %c0_22, %c0_23], %49 {strides = array<i32>} : memref<1x1x3xf32, #tpu.memory_space<vmem>>, vector<1x1x3xf32>,
    return
  }
  func.func @transform_0(%arg0: i32) -> (i32, i32, i32) {
    %c0_i32 = arith.constant 0 : i32
    %c0_i32_0 = arith.constant 0 : i32
    %c0_i32_1 = arith.constant 0 : i32
    return %arg0, %c0_i32, %c0_i32_0 : i32, i32, i32
  }
  func.func @transform_1(%arg0: i32) -> (i32, i32, i32) {
    %c0_i32 = arith.constant 0 : i32
    %c0_i32_0 = arith.constant 0 : i32
    %c0_i32_1 = arith.constant 0 : i32
    return %arg0, %c0_i32, %c0_i32_0 : i32, i32, i32
  }
  func.func @transform_2(%arg0: i32) -> (i32, i32) {
    %c0_i32 = arith.constant 0 : i32
    %c0_i32_0 = arith.constant 0 : i32
    %c0_i32_1 = arith.constant 0 : i32
    return %c0_i32, %c0_i32_0 : i32, i32
  }
  func.func @transform_3(%arg0: i32) -> (i32, i32) {
    %c0_i32 = arith.constant 0 : i32
    %c0_i32_0 = arith.constant 0 : i32
    %c0_i32_1 = arith.constant 0 : i32
    return %c0_i32, %c0_i32_0 : i32, i32
  }
  func.func @transform_4(%arg0: i32) -> (i32, i32) {
    %c0_i32 = arith.constant 0 : i32
    %c0_i32_0 = arith.constant 0 : i32
    %c0_i32_1 = arith.constant 0 : i32
    return %c0_i32, %c0_i32_0 : i32, i32
  }
  func.func @transform_5(%arg0: i32) -> (i32, i32, i32) {
    %c0_i32 = arith.constant 0 : i32
    %c0_i32_0 = arith.constant 0 : i32
    %c0_i32_1 = arith.constant 0 : i32
    return %arg0, %c0_i32, %c0_i32_0 : i32, i32, i32
  }
}

</mosaic_0001>

<llo_original>
// kernel: tpu_custom_call.1
$region0: #{tpu_custom_call.1}
  #allocation0 [shape = 'u32[]', space=smem, size = 0x4, offset = 0x4, fixed_abs, tag = 'smem constant byte address 0x4 - core index']
  #allocation1 [shape = 'u32[144,128]{1,0:T(1,128)}', space=vmem, size = 0x12000, scoped, tag = 'internal scratch']
  %s0 = inlined_call_operand.vmem [shape: f32[2,16,48], index: 0, kind: input, shape index: {}]
  %s1 = inlined_call_operand.hbm [shape: f32[2,16,48], index: 1, kind: input, shape index: {}]
  %s2 = inlined_call_operand.vmem [shape: f32[48,18], index: 2, kind: input, shape index: {}]
  %s3 = inlined_call_operand.vmem [shape: f32[40,80], index: 3, kind: input, shape index: {}]
  %s4 = inlined_call_operand.vmem [shape: f32[18,3], index: 4, kind: input, shape index: {}]
  %s5 = inlined_call_operand.hbm [shape: f32[2,1,3], index: 5, kind: output, shape index: {}]
  %s6 = sld [smem:[#allocation0]]
  $region57: #{tpu_custom_call.1} parent=0
    _
  %s8 = ssub.s32 1, %s6
  %s9 = scalar_select 0, %s8, %s6
  $region1: #{tpu_custom_call.1} parent=0
    #allocation2 [shape = 'u8[16384]{0}', space=vmem, size = 0x4000, scoped, tag = 'input window, operand 1']
    #allocation3 [shape = 's32[2]{0}', space=sflag, size = 0x8, scoped, tag = 'scoped memory for tpu_custom_call.1']
    #allocation4 [shape = 's32[2]{0}', space=sflag, size = 0x8, scoped, tag = 'scoped memory for tpu_custom_call.1']
    #allocation5 [shape = 'u8[1024]{0}', space=vmem, size = 0x400, scoped, tag = 'output window, operand 0']
    %10 = vsyncpa [#allocation3], 0
    %s11 = scalar_lea.sflag [#allocation3], 1
    %12 = vsyncpa %s11, 0
    %13 = vsyncpa [#allocation4], 0
    %s14 = scalar_lea.sflag [#allocation4], 1
    %15 = vsyncpa %s14, 0
    loop: start=0, step=1, limit=4
    $region2: #{tpu_custom_call.1} parent=1 // loop_pre_header
      _
    $region3: #{tpu_custom_call.1} parent=1 // loop_header
      %s17 = sphi 0, %s21
      %p18 = scmp.ge.s32.totalorder %s17, 4
      %s27 = sphi 0, %s29
      %s30 = sphi 0, %s27
      %s31 = sphi 0, %s30
      %s47 = sphi 0, %s31
      %s53 = sphi 0, %s55
      %s56 = sphi 0, %s53
      %s57 = sphi 0, %s56
      %s73 = sphi 0, %s57
      %s77 = sphi 0, %s77
      %s79 = sphi 0, %s77
      %s80 = sphi 0, %s79
      %s94 = sphi 0, %s80
      %s98 = sphi 0, %s98
      %s100 = sphi 0, %s98
      %s101 = sphi 0, %s100
      %s115 = sphi 0, %s101
      %s119 = sphi 0, %s119
      %s121 = sphi 0, %s119
      %s122 = sphi 0, %s121
      %s136 = sphi 0, %s122
      %s142 = sphi 0, %s144
      %s145 = sphi 0, %s142
      %s146 = sphi 0, %s145
      %s162 = sphi 0, %s146
    $region4: #{tpu_custom_call.1} parent=1 // loop_header_branch
      %20 = sbr.rel (%p18) target = $region8
    $region5: #{tpu_custom_call.1} parent=1 // loop_body
      %s22 = ssub.s32 %s17, 1
      %s23 = ssub.s32 %s17, 2
      %s24 = sadd.s32 %s17, 1
      %s25 = ssub.s32 %s17, %s24
      %p26 = scmp.eq.s32.totalorder %s25, 0
      %s28 = sadd.s32 %s27, 1
      %s29 = scalar_select %p26, %s27, %s28
      %p32 = pneg %p26
      %p33 = scmp.eq.s32.totalorder %s17, 1
      %p34 = por %p32, %p33
      %p35 = scmp.ne.s32.totalorder %s27, %s30
      %p36 = scmp.eq.s32.totalorder %s17, 0
      %p37 = por %p35, %p36
      %p38 = scmp.ne.s32.totalorder %s27, %s30
      %p39 = scmp.eq.s32.totalorder %s22, 1
      %p40 = por %p38, %p39
      %p41 = scmp.ne.s32.totalorder %s30, %s31
      %p42 = scmp.eq.s32.totalorder %s22, 0
      %p43 = por %p41, %p42
      %p44 = scmp.ne.s32.totalorder %s30, %s31
      %p45 = scmp.eq.s32.totalorder %s23, 1
      %p46 = por %p44, %p45
      %p48 = scmp.ne.s32.totalorder %s31, %s47
      %p49 = scmp.eq.s32.totalorder %s23, 0
      %p50 = por %p48, %p49
      %s51 = ssub.s32 %s17, %s24
      %p52 = scmp.eq.s32.totalorder %s51, 0
      %s54 = sadd.s32 %s53, 1
      %s55 = scalar_select %p52, %s53, %s54
      %p58 = pneg %p52
      %p59 = scmp.eq.s32.totalorder %s17, 1
      %p60 = por %p58, %p59
      %p61 = scmp.ne.s32.totalorder %s53, %s56
      %p62 = scmp.eq.s32.totalorder %s17, 0
      %p63 = por %p61, %p62
      %p64 = scmp.ne.s32.totalorder %s53, %s56
      %p65 = scmp.eq.s32.totalorder %s22, 1
      %p66 = por %p64, %p65
      %p67 = scmp.ne.s32.totalorder %s56, %s57
      %p68 = scmp.eq.s32.totalorder %s22, 0
      %p69 = por %p67, %p68
      %p70 = scmp.ne.s32.totalorder %s56, %s57
      %p71 = scmp.eq.s32.totalorder %s23, 1
      %p72 = por %p70, %p71
      %p74 = scmp.ne.s32.totalorder %s57, %s73
      %p75 = scmp.eq.s32.totalorder %s23, 0
      %p76 = por %p74, %p75
      %s78 = sadd.s32 %s77, 1
      %p81 = scmp.eq.s32.totalorder %s17, 1
      %p82 = scmp.ne.s32.totalorder %s77, %s79
      %p83 = scmp.eq.s32.totalorder %s17, 0
      %p84 = por %p82, %p83
      %p85 = scmp.ne.s32.totalorder %s77, %s79
      %p86 = scmp.eq.s32.totalorder %s22, 1
      %p87 = por %p85, %p86
      %p88 = scmp.ne.s32.totalorder %s79, %s80
      %p89 = scmp.eq.s32.totalorder %s22, 0
      %p90 = por %p88, %p89
      %p91 = scmp.ne.s32.totalorder %s79, %s80
      %p92 = scmp.eq.s32.totalorder %s23, 1
      %p93 = por %p91, %p92
      %p95 = scmp.ne.s32.totalorder %s80, %s94
      %p96 = scmp.eq.s32.totalorder %s23, 0
      %p97 = por %p95, %p96
      %s99 = sadd.s32 %s98, 1
      %p102 = scmp.eq.s32.totalorder %s17, 1
      %p103 = scmp.ne.s32.totalorder %s98, %s100
      %p104 = scmp.eq.s32.totalorder %s17, 0
      %p105 = por %p103, %p104
      %p106 = scmp.ne.s32.totalorder %s98, %s100
      %p107 = scmp.eq.s32.totalorder %s22, 1
      %p108 = por %p106, %p107
      %p109 = scmp.ne.s32.totalorder %s100, %s101
      %p110 = scmp.eq.s32.totalorder %s22, 0
      %p111 = por %p109, %p110
      %p112 = scmp.ne.s32.totalorder %s100, %s101
      %p113 = scmp.eq.s32.totalorder %s23, 1
      %p114 = por %p112, %p113
      %p116 = scmp.ne.s32.totalorder %s101, %s115
      %p117 = scmp.eq.s32.totalorder %s23, 0
      %p118 = por %p116, %p117
      %s120 = sadd.s32 %s119, 1
      %p123 = scmp.eq.s32.totalorder %s17, 1
      %p124 = scmp.ne.s32.totalorder %s119, %s121
      %p125 = scmp.eq.s32.totalorder %s17, 0
      %p126 = por %p124, %p125
      %p127 = scmp.ne.s32.totalorder %s119, %s121
      %p128 = scmp.eq.s32.totalorder %s22, 1
      %p129 = por %p127, %p128
      %p130 = scmp.ne.s32.totalorder %s121, %s122
      %p131 = scmp.eq.s32.totalorder %s22, 0
      %p132 = por %p130, %p131
      %p133 = scmp.ne.s32.totalorder %s121, %s122
      %p134 = scmp.eq.s32.totalorder %s23, 1
      %p135 = por %p133, %p134
      %p137 = scmp.ne.s32.totalorder %s122, %s136
      %p138 = scmp.eq.s32.totalorder %s23, 0
      %p139 = por %p137, %p138
      %s140 = ssub.s32 %s17, %s24
      %p141 = scmp.eq.s32.totalorder %s140, 0
      %s143 = sadd.s32 %s142, 1
      %s144 = scalar_select %p141, %s142, %s143
      %p147 = pneg %p141
      %p148 = scmp.eq.s32.totalorder %s17, 1
      %p149 = por %p147, %p148
      %p150 = scmp.ne.s32.totalorder %s142, %s145
      %p151 = scmp.eq.s32.totalorder %s17, 0
      %p152 = por %p150, %p151
      %p153 = scmp.ne.s32.totalorder %s142, %s145
      %p154 = scmp.eq.s32.totalorder %s22, 1
      %p155 = por %p153, %p154
      %p156 = scmp.ne.s32.totalorder %s145, %s146
      %p157 = scmp.eq.s32.totalorder %s22, 0
      %p158 = por %p156, %p157
      %p159 = scmp.ne.s32.totalorder %s145, %s146
      %p160 = scmp.eq.s32.totalorder %s23, 1
      %p161 = por %p159, %p160
      %p163 = scmp.ne.s32.totalorder %s146, %s162
      %p164 = scmp.eq.s32.totalorder %s23, 0
      %p165 = por %p163, %p164
      %p166 = scmp.le.s32.totalorder 1, %s17
      %p167 = scmp.lt.s32.totalorder %s17, 3
      %p168 = pnand %p166, %p167
      %p169 = pneg %p168
      // Predicated region
      $region9: #{tpu_custom_call.1} parent=5 // pred_check
        _
      $region10: #{tpu_custom_call.1} parent=5 // pred_check_branch
        %171 = sbr.rel (%p168) target = $region12
      $region11: #{tpu_custom_call.1} parent=5 // pred_region
        %s172 = ssub.s32 %s17, 1
        // Predicated region
        $region13: #{tpu_custom_call.1} parent=11 // pred_check
          %p173 = pneg %p90
        $region14: #{tpu_custom_call.1} parent=11 // pred_check_branch
          %175 = sbr.rel (%p173) target = $region16
        $region15: #{tpu_custom_call.1} parent=11 // pred_region
          _
        $region16: #{tpu_custom_call.1} parent=11 // pred_fallthru
          _
        // Predicated region
        $region17: #{tpu_custom_call.1} parent=11 // pred_check
          %p176 = pneg %p111
        $region18: #{tpu_custom_call.1} parent=11 // pred_check_branch
          %178 = sbr.rel (%p176) target = $region20
        $region19: #{tpu_custom_call.1} parent=11 // pred_region
          _
        $region20: #{tpu_custom_call.1} parent=11 // pred_fallthru
          _
        // Predicated region
        $region21: #{tpu_custom_call.1} parent=11 // pred_check
          %p179 = pneg %p132
        $region22: #{tpu_custom_call.1} parent=11 // pred_check_branch
          %181 = sbr.rel (%p179) target = $region24
        $region23: #{tpu_custom_call.1} parent=11 // pred_region
          _
        $region24: #{tpu_custom_call.1} parent=11 // pred_fallthru
          _
      $region12: #{tpu_custom_call.1} parent=5 // pred_fallthru
        _
      %p182 = scmp.lt.s32.totalorder %s17, 2
      // Predicated region
      $region25: #{tpu_custom_call.1} parent=5 // pred_check
        %p183 = pneg %p182
      $region26: #{tpu_custom_call.1} parent=5 // pred_check_branch
        %185 = sbr.rel (%p183) target = $region28
      $region27: #{tpu_custom_call.1} parent=5 // pred_region
        // Predicated region
        $region29: #{tpu_custom_call.1} parent=27 // pred_check
          %p186 = pneg %p37
        $region30: #{tpu_custom_call.1} parent=27 // pred_check_branch
          %188 = sbr.rel (%p186) target = $region32
        $region31: #{tpu_custom_call.1} parent=27 // pred_region
          %p189 = scmp.lt.s32.totalorder %s17, 1
          %s190 = scalar_select %p189, %s17, 1
          %s191 = smul.addr %s190, 2
          %s192 = smul.addr %s191, 8
          %s193 = scalar_lea.vmem %s0, %s192
        $region32: #{tpu_custom_call.1} parent=27 // pred_fallthru
          _
        // Predicated region
        $region33: #{tpu_custom_call.1} parent=27 // pred_check
          %p194 = pneg %p63
        $region34: #{tpu_custom_call.1} parent=27 // pred_check_branch
          %196 = sbr.rel (%p194) target = $region36
        $region35: #{tpu_custom_call.1} parent=27 // pred_region
          %s197 = sand.u32 %s53, 1
          %s198 = scalar_lea.sflag [#allocation3], %s197
          %s199 = sand.u32 %s53, 1
          %s200 = smul.addr %s199, 16
          %s201 = scalar_lea.vmem [#allocation2], %s200
          %s203 = ssub.s32 256, 256
          %204 = vsyncadd %s198, %s203
          %s205 = smul.addr %s17, 2
          %s206 = smul.addr %s205, 128
          %s207 = scalar_lea.hbm %s1, %s206
          %s208 = sshll.u32 %s201, 4
          %s209 = int_to_ptr.vmem [resolvable:$true] %s208
          %214 = dma.hbm_to_vmem [thread:$0]  %s207, 256, %s209, %s198, 128, 128, 8
        $region36: #{tpu_custom_call.1} parent=27 // pred_fallthru
          _
      $region28: #{tpu_custom_call.1} parent=5 // pred_fallthru
        _
      %p215 = scmp.le.s32.totalorder 1, %s17
      %p216 = scmp.lt.s32.totalorder %s17, 3
      %p217 = pnand %p215, %p216
      %p218 = pneg %p217
      // Predicated region
      $region37: #{tpu_custom_call.1} parent=5 // pred_check
        _
      $region38: #{tpu_custom_call.1} parent=5 // pred_check_branch
        %220 = sbr.rel (%p217) target = $region40
      $region39: #{tpu_custom_call.1} parent=5 // pred_region
        %s221 = ssub.s32 %s17, 1
        %s222 = sand.u32 %s56, 1
        %s223 = scalar_lea.sflag [#allocation3], %s222
        %s224 = sand.u32 %s56, 1
        %s225 = smul.addr %s224, 16
        %s226 = scalar_lea.vmem [#allocation2], %s225
        // Predicated region
        $region41: #{tpu_custom_call.1} parent=39 // pred_check
          %p227 = pneg %p69
        $region42: #{tpu_custom_call.1} parent=39 // pred_check_branch
          %229 = sbr.rel (%p227) target = $region44
        $region43: #{tpu_custom_call.1} parent=39 // pred_region
          %230 = dma.done %s223, 256
        $region44: #{tpu_custom_call.1} parent=39 // pred_fallthru
          _
        %p231 = scmp.lt.s32.totalorder %s22, 1
        %s232 = scalar_select %p231, %s22, 1
        %s233 = smul.addr %s232, 2
        %s234 = smul.addr %s233, 8
        %s235 = scalar_lea.vmem %s0, %s234
        %p236 = pneg %p43
        %p237 = pneg %p40
        %s238 = sand.u32 %s56, 1
        %s239 = scalar_lea.sflag [#allocation3], %s238
        %s240 = sand.u32 %s56, 1
        %s241 = smul.addr %s240, 16
        %s242 = scalar_lea.vmem [#allocation2], %s241
        %p243 = pneg %p69
        %p244 = pneg %p66
        %p245 = pneg %p90
        %p246 = pneg %p87
        %p247 = pneg %p111
        %p248 = pneg %p108
        %p249 = pneg %p132
        %p250 = pneg %p129
        %p251 = pneg %p158
        %p252 = pneg %p155
        %s253 = sand.u32 %s145, 1
        %s254 = scalar_lea.sflag [#allocation4], %s253
        %s255 = sand.u32 %s145, 1
        %s256 = scalar_lea.vmem [#allocation5], %s255
        %p257 = scmp.lt.s32.totalorder %s22, 1
        %s258 = scalar_select %p257, %s22, 1
        %s259 = smul.addr %s258, 2
        %s260 = smul.addr %s259, 8
        %s261 = scalar_lea.vmem %s0, %s260
        %v262 = vld [vmem:[%s261] sm:$0xff]
        %v263 = vld [vmem:[%s261 + $0x8] sm:$0xff]
        %v264 = vld [vmem:[%s226] sm:$0xff]
        %v265 = vld [vmem:[%s226 + $0x8] sm:$0xff]
        %v266 = vmul.f32 %v262, %v262
        %v267 = vmul.f32 %v263, %v263
        %v268 = vmul.f32 %v264, %v264
        %v269 = vmul.f32 %v265, %v265
        %v270 = vmul.f32 %v262, %v264
        %v271 = vmul.f32 %v263, %v265
        %v272 = vld [vmem:[%s2] sm:$0xff]
        %v273 = vld [vmem:[%s2 + $0x8] sm:$0xff]
        %v274 = vld [vmem:[%s2 + $0x10] sm:$0xff]
        %v275 = vld [vmem:[%s2 + $0x18] sm:$0xff]
        %v276 = vld [vmem:[%s2 + $0x20] sm:$0xff]
        %v277 = vld [vmem:[%s2 + $0x28] sm:$0xff]
        %vm278 = vcmask 392192
        %v280 = vsel %vm278, %v262, 0
        %v283 = vsel %vm278, %v263, 0
        %v286 = vsel %vm278, %v264, 0
        %v289 = vsel %vm278, %v265, 0
        %v292 = vsel %vm278, %v266, 0
        %v295 = vsel %vm278, %v267, 0
        %v298 = vsel %vm278, %v268, 0
        %v301 = vsel %vm278, %v269, 0
        %v304 = vsel %vm278, %v270, 0
        %v307 = vsel %vm278, %v271, 0
        %309 = vmatprep.subr.mxu0 0.0
        %310 = vmatpush1.msra.mxu0 %v272
        %311 = vmatprep.subr.mxu0 0.0
        %312 = vmatpush1.msra.mxu0 %v273
        %313 = vmatprep.subr.mxu0 0.0
        %314 = vmatpush1.msra.mxu0 %v274
        %315 = vmatprep.subr.mxu0 0.0
        %316 = vmatpush1.msra.mxu0 %v275
        %317 = vmatprep.subr.mxu0 0.0
        %318 = vmatpush1.msra.mxu0 %v276
        %319 = vmatprep.subr.mxu0 0.0
        %320 = vmatpush1.msra.mxu0 %v277
        %321 = vmatprep.subr.mxu0 0.0
        %322 = vmatpush1.msra.mxu0 0.0
        %323 = vmatprep.subr.mxu0 0.0
        %324 = vmatpush1.msra.mxu0 0.0
        %325 = vmatprep.subr.mxu0 0.0
        %326 = vmatpush1.msra.mxu0 0.0
        %327 = vmatprep.subr.mxu0 0.0
        %328 = vmatpush1.msra.mxu0 0.0
        %329 = vmatprep.subr.mxu0 0.0
        %330 = vmatpush1.msra.mxu0 0.0
        %331 = vmatprep.subr.mxu0 0.0
        %332 = vmatpush1.msra.mxu0 0.0
        %333 = vmatprep.subr.mxu0 0.0
        %334 = vmatpush1.msra.mxu0 0.0
        %335 = vmatprep.subr.mxu0 0.0
        %336 = vmatpush1.msra.mxu0 0.0
        %337 = vmatprep.subr.mxu0 0.0
        %338 = vmatpush1.msra.mxu0 0.0
        %339 = vmatprep.subr.mxu0 0.0
        %340 = vmatpush1.msra.mxu0 0.0
        %341 = vmatprep.subr.mxu0 0.0
        %342 = vmatpush1.msra.mxu0 0.0
        %343 = vmatprep.subr.mxu0 0.0
        %344 = vmatpush1.msra.mxu0 0.0
        %345 = vmatprep.subr.mxu0 0.0
        %346 = vmatpush1.msra.mxu0 0.0
        %347 = vmatprep.subr.mxu0 0.0
        %348 = vmatpush1.msra.mxu0 0.0
        %349 = vmatprep.subr.mxu0 0.0
        %350 = vmatpush1.msra.mxu0 0.0
        %351 = vmatprep.subr.mxu0 0.0
        %352 = vmatpush1.msra.mxu0 0.0
        %353 = vmatprep.subr.mxu0 0.0
        %354 = vmatpush1.msra.mxu0 0.0
        %355 = vmatprep.subr.mxu0 0.0
        %356 = vmatpush1.msra.mxu0 0.0
        %357 = vmatprep.subr.mxu0 0.0
        %358 = vmatpush1.msra.mxu0 0.0
        %359 = vmatprep.subr.mxu0 0.0
        %360 = vmatpush1.msra.mxu0 0.0
        %361 = vmatprep.subr.mxu0 0.0
        %362 = vmatpush1.msra.mxu0 0.0
        %363 = vmatprep.subr.mxu0 0.0
        %364 = vmatpush1.msra.mxu0 0.0
        %365 = vmatprep.subr.mxu0 0.0
        %366 = vmatpush1.msra.mxu0 0.0
        %367 = vmatprep.subr.mxu0 0.0
        %368 = vmatpush1.msra.mxu0 0.0
        %369 = vmatprep.subr.mxu0 0.0
        %370 = vmatpush1.msra.mxu0 0.0
        %371 = vmatprep.subr.mxu0 0.0
        %372 = vmatpush1.msra.mxu0 0.0
        %373 = vmatprep.mubr.f32.mxu0 0.0
        %374 = vmatmul.mubr.f32.gmra.mrb[0].mxu0 %v280
        %v375 = vpop.f32.mrb[0].mxu0
        %v376 = vadd.f32 0.0, %v375
        %v377 = vpop.f32.mrb[0].mxu0
        %378 = vmatprep.mubr.f32.mxu0 0.0
        %379 = vmatmul.mubr.f32.gmra.mrb[0].mxu0 %v283
        %v380 = vpop.f32.mrb[0].mxu0
        %v381 = vadd.f32 0.0, %v380
        %v382 = vpop.f32.mrb[0].mxu0
        %383 = vmatprep.mubr.f32.mxu0 0.0
        %384 = vmatmul.mubr.f32.gmra.mrb[0].mxu0 %v286
        %v385 = vpop.f32.mrb[0].mxu0
        %v386 = vadd.f32 0.0, %v385
        %v387 = vpop.f32.mrb[0].mxu0
        %388 = vmatprep.mubr.f32.mxu0 0.0
        %389 = vmatmul.mubr.f32.gmra.mrb[0].mxu0 %v289
        %v390 = vpop.f32.mrb[0].mxu0
        %v391 = vadd.f32 0.0, %v390
        %v392 = vpop.f32.mrb[0].mxu0
        %393 = vmatprep.mubr.f32.mxu0 0.0
        %394 = vmatmul.mubr.f32.gmra.mrb[0].mxu0 %v292
        %v395 = vpop.f32.mrb[0].mxu0
        %v396 = vadd.f32 0.0, %v395
        %v397 = vpop.f32.mrb[0].mxu0
        %398 = vmatprep.mubr.f32.mxu0 0.0
        %399 = vmatmul.mubr.f32.gmra.mrb[0].mxu0 %v295
        %v400 = vpop.f32.mrb[0].mxu0
        %v401 = vadd.f32 0.0, %v400
        %v402 = vpop.f32.mrb[0].mxu0
        %403 = vmatprep.mubr.f32.mxu0 0.0
        %404 = vmatmul.mubr.f32.gmra.mrb[0].mxu0 %v298
        %v405 = vpop.f32.mrb[0].mxu0
        %v406 = vadd.f32 0.0, %v405
        %v407 = vpop.f32.mrb[0].mxu0
        %408 = vmatprep.mubr.f32.mxu0 0.0
        %409 = vmatmul.mubr.f32.gmra.mrb[0].mxu0 %v301
        %v410 = vpop.f32.mrb[0].mxu0
        %v411 = vadd.f32 0.0, %v410
        %v412 = vpop.f32.mrb[0].mxu0
        %413 = vmatprep.mubr.f32.mxu0 0.0
        %414 = vmatmul.mubr.f32.gmra.mrb[0].mxu0 %v304
        %v415 = vpop.f32.mrb[0].mxu0
        %v416 = vadd.f32 0.0, %v415
        %v417 = vpop.f32.mrb[0].mxu0
        %418 = vmatprep.mubr.f32.mxu0 0.0
        %419 = vmatmul.mubr.f32.gmra.mrb[0].mxu0 %v307
        %v420 = vpop.f32.mrb[0].mxu0
        %v421 = vadd.f32 0.0, %v420
        %v422 = vpop.f32.mrb[0].mxu0
        %423 = vdwg.mxu0
        %v424 = vld [vmem:[%s3] sm:$0xff]
        %v425 = vld [vmem:[%s3 + $0x8] sm:$0xff]
        %v426 = vld [vmem:[%s3 + $0x10] sm:$0xff]
        %v427 = vld [vmem:[%s3 + $0x18] sm:$0xff]
        %v428 = vld [vmem:[%s3 + $0x20] sm:$0xff]
        %vm429 = vcmask 654336
        %v431 = vsel %vm429, %v424, 0
        %v434 = vsel %vm429, %v425, 0
        %v437 = vsel %vm429, %v426, 0
        %v440 = vsel %vm429, %v427, 0
        %v443 = vsel %vm429, %v428, 0
        %445 = vmatprep.subr.mxu0 0.0
        %446 = vmatpush1.msra.mxu0 %v376
        %447 = vmatprep.subr.mxu0 0.0
        %448 = vmatpush1.msra.mxu0 %v381
        %449 = vmatprep.subr.mxu0 0.0
        %450 = vmatpush1.msra.mxu0 %v386
        %451 = vmatprep.subr.mxu0 0.0
        %452 = vmatpush1.msra.mxu0 %v391
        %453 = vmatprep.subr.mxu0 0.0
        %454 = vmatpush1.msra.mxu0 %v396
        %455 = vmatprep.subr.mxu0 0.0
        %456 = vmatpush1.msra.mxu0 %v401
        %457 = vmatprep.subr.mxu0 0.0
        %458 = vmatpush1.msra.mxu0 %v406
        %459 = vmatprep.subr.mxu0 0.0
        %460 = vmatpush1.msra.mxu0 %v411
        %461 = vmatprep.subr.mxu0 0.0
        %462 = vmatpush1.msra.mxu0 %v416
        %463 = vmatprep.subr.mxu0 0.0
        %464 = vmatpush1.msra.mxu0 %v421
        %465 = vmatprep.subr.mxu0 0.0
        %466 = vmatpush1.msra.mxu0 0.0
        %467 = vmatprep.subr.mxu0 0.0
        %468 = vmatpush1.msra.mxu0 0.0
        %469 = vmatprep.subr.mxu0 0.0
        %470 = vmatpush1.msra.mxu0 0.0
        %471 = vmatprep.subr.mxu0 0.0
        %472 = vmatpush1.msra.mxu0 0.0
        %473 = vmatprep.subr.mxu0 0.0
        %474 = vmatpush1.msra.mxu0 0.0
        %475 = vmatprep.subr.mxu0 0.0
        %476 = vmatpush1.msra.mxu0 0.0
        %477 = vmatprep.subr.mxu0 0.0
        %478 = vmatpush1.msra.mxu0 0.0
        %479 = vmatprep.subr.mxu0 0.0
        %480 = vmatpush1.msra.mxu0 0.0
        %481 = vmatprep.subr.mxu0 0.0
        %482 = vmatpush1.msra.mxu0 0.0
        %483 = vmatprep.subr.mxu0 0.0
        %484 = vmatpush1.msra.mxu0 0.0
        %485 = vmatprep.subr.mxu0 0.0
        %486 = vmatpush1.msra.mxu0 0.0
        %487 = vmatprep.subr.mxu0 0.0
        %488 = vmatpush1.msra.mxu0 0.0
        %489 = vmatprep.subr.mxu0 0.0
        %490 = vmatpush1.msra.mxu0 0.0
        %491 = vmatprep.subr.mxu0 0.0
        %492 = vmatpush1.msra.mxu0 0.0
        %493 = vmatprep.subr.mxu0 0.0
        %494 = vmatpush1.msra.mxu0 0.0
        %495 = vmatprep.subr.mxu0 0.0
        %496 = vmatpush1.msra.mxu0 0.0
        %497 = vmatprep.subr.mxu0 0.0
        %498 = vmatpush1.msra.mxu0 0.0
        %499 = vmatprep.subr.mxu0 0.0
        %500 = vmatpush1.msra.mxu0 0.0
        %501 = vmatprep.subr.mxu0 0.0
        %502 = vmatpush1.msra.mxu0 0.0
        %503 = vmatprep.subr.mxu0 0.0
        %504 = vmatpush1.msra.mxu0 0.0
        %505 = vmatprep.subr.mxu0 0.0
        %506 = vmatpush1.msra.mxu0 0.0
        %507 = vmatprep.subr.mxu0 0.0
        %508 = vmatpush1.msra.mxu0 0.0
        %509 = vmatprep.mubr.f32.mxu0 0.0
        %510 = vmatmul.mubr.f32.gmra.mrb[0].mxu0 %v431
        %v511 = vpop.f32.mrb[0].mxu0
        %v512 = vadd.f32 0.0, %v511
        %v513 = vpop.f32.mrb[0].mxu0
        %514 = vmatprep.mubr.f32.mxu0 0.0
        %515 = vmatmul.mubr.f32.gmra.mrb[0].mxu0 %v434
        %v516 = vpop.f32.mrb[0].mxu0
        %v517 = vadd.f32 0.0, %v516
        %v518 = vpop.f32.mrb[0].mxu0
        %519 = vmatprep.mubr.f32.mxu0 0.0
        %520 = vmatmul.mubr.f32.gmra.mrb[0].mxu0 %v437
        %v521 = vpop.f32.mrb[0].mxu0
        %v522 = vadd.f32 0.0, %v521
        %v523 = vpop.f32.mrb[0].mxu0
        %524 = vmatprep.mubr.f32.mxu0 0.0
        %525 = vmatmul.mubr.f32.gmra.mrb[0].mxu0 %v440
        %v526 = vpop.f32.mrb[0].mxu0
        %v527 = vadd.f32 0.0, %v526
        %v528 = vpop.f32.mrb[0].mxu0
        %529 = vmatprep.mubr.f32.mxu0 0.0
        %530 = vmatmul.mubr.f32.gmra.mrb[0].mxu0 %v443
        %v531 = vpop.f32.mrb[0].mxu0
        %v532 = vadd.f32 0.0, %v531
        %v533 = vpop.f32.mrb[0].mxu0
        %534 = vdwg.mxu0
        %v535 = vmul.f32 %v512, %v512
        %v536 = vmul.f32 %v517, %v517
        %v537 = vmul.f32 %v512, %v517
        %v538 = vsub.f32 %v522, %v535
        %v539 = vsub.f32 %v527, %v536
        %v540 = vsub.f32 %v532, %v537
        %v541 = vmul.f32 %v537, 2.0
        %v542 = vadd.f32 %v541, 6.5025
        %v543 = vmul.f32 %v540, 2.0
        %v544 = vadd.f32 %v543, 58.5225
        %v545 = vmul.f32 %v542, %v544
        %v546 = vadd.f32 %v535, %v536
        %v547 = vadd.f32 %v546, 6.5025
        %v548 = vadd.f32 %v538, %v539
        %v549 = vadd.f32 %v548, 58.5225
        %v550 = vmul.f32 %v547, %v549
        %v551 = vrcp.pop %v550
        %v552 = vmul.f32 %v545, %v551
        %vm553 = vcmask 144384
        %v554 = vsel %vm553, %v552, 0.0
        %v555 = vrot.slane %v554, 4
        %v556 = vadd.f32 %v554, %v555
        %v557 = vrot.slane %v556, 2
        %v558 = vadd.f32 %v556, %v557
        %v559 = vrot.slane %v558, 1
        %v560 = vadd.f32 %v558, %v559
        %v561 = vld [vmem:[%s4] sm:$0xff]
        %v562 = vld [vmem:[%s4 + $0x8] sm:$0xff]
        %v563 = vld [vmem:[%s4 + $0x10] sm:$0x3]
        %vm564 = vcmask 146432
        %v566 = vsel %vm564, %v560, 0
        %vm568 = vcmask 1041408
        %v570 = vsel %vm568, %v563, 0
        %572 = vmatprep.subr.mxu0 0.0
        %573 = vmatpush1.msra.mxu0 %v561
        %574 = vmatprep.subr.mxu0 0.0
        %575 = vmatpush1.msra.mxu0 %v562
        %576 = vmatprep.subr.mxu0 0.0
        %577 = vmatpush1.msra.mxu0 %v570
        %578 = vmatprep.subr.mxu0 0.0
        %579 = vmatpush1.msra.mxu0 0.0
        %580 = vmatprep.subr.mxu0 0.0
        %581 = vmatpush1.msra.mxu0 0.0
        %582 = vmatprep.subr.mxu0 0.0
        %583 = vmatpush1.msra.mxu0 0.0
        %584 = vmatprep.subr.mxu0 0.0
        %585 = vmatpush1.msra.mxu0 0.0
        %586 = vmatprep.subr.mxu0 0.0
        %587 = vmatpush1.msra.mxu0 0.0
        %588 = vmatprep.subr.mxu0 0.0
        %589 = vmatpush1.msra.mxu0 0.0
        %590 = vmatprep.subr.mxu0 0.0
        %591 = vmatpush1.msra.mxu0 0.0
        %592 = vmatprep.subr.mxu0 0.0
        %593 = vmatpush1.msra.mxu0 0.0
        %594 = vmatprep.subr.mxu0 0.0
        %595 = vmatpush1.msra.mxu0 0.0
        %596 = vmatprep.subr.mxu0 0.0
        %597 = vmatpush1.msra.mxu0 0.0
        %598 = vmatprep.subr.mxu0 0.0
        %599 = vmatpush1.msra.mxu0 0.0
        %600 = vmatprep.subr.mxu0 0.0
        %601 = vmatpush1.msra.mxu0 0.0
        %602 = vmatprep.subr.mxu0 0.0
        %603 = vmatpush1.msra.mxu0 0.0
        %604 = vmatprep.subr.mxu0 0.0
        %605 = vmatpush1.msra.mxu0 0.0
        %606 = vmatprep.subr.mxu0 0.0
        %607 = vmatpush1.msra.mxu0 0.0
        %608 = vmatprep.subr.mxu0 0.0
        %609 = vmatpush1.msra.mxu0 0.0
        %610 = vmatprep.subr.mxu0 0.0
        %611 = vmatpush1.msra.mxu0 0.0
        %612 = vmatprep.subr.mxu0 0.0
        %613 = vmatpush1.msra.mxu0 0.0
        %614 = vmatprep.subr.mxu0 0.0
        %615 = vmatpush1.msra.mxu0 0.0
        %616 = vmatprep.subr.mxu0 0.0
        %617 = vmatpush1.msra.mxu0 0.0
        %618 = vmatprep.subr.mxu0 0.0
        %619 = vmatpush1.msra.mxu0 0.0
        %620 = vmatprep.subr.mxu0 0.0
        %621 = vmatpush1.msra.mxu0 0.0
        %622 = vmatprep.subr.mxu0 0.0
        %623 = vmatpush1.msra.mxu0 0.0
        %624 = vmatprep.subr.mxu0 0.0
        %625 = vmatpush1.msra.mxu0 0.0
        %626 = vmatprep.subr.mxu0 0.0
        %627 = vmatpush1.msra.mxu0 0.0
        %628 = vmatprep.subr.mxu0 0.0
        %629 = vmatpush1.msra.mxu0 0.0
        %630 = vmatprep.subr.mxu0 0.0
        %631 = vmatpush1.msra.mxu0 0.0
        %632 = vmatprep.subr.mxu0 0.0
        %633 = vmatpush1.msra.mxu0 0.0
        %634 = vmatprep.subr.mxu0 0.0
        %635 = vmatpush1.msra.mxu0 0.0
        %636 = vmatprep.mubr.f32.mxu0 0.0
        %637 = vmatmul.mubr.f32.gmra.mrb[0].mxu0 %v566
        %v638 = vpop.f32.mrb[0].mxu0
        %v639 = vadd.f32 0.0, %v638
        %v640 = vpop.f32.mrb[0].mxu0
        %641 = vdwg.mxu0
        %v642 = vmul.f32 %v639, 0.027777778
        %vm643 = vcmask 16384
        %644 = vst.msk [vmem:[%s256] sm:$0x1] %vm643, %v642
        %s645 = sand.u32 %s145, 1
        %s646 = scalar_lea.sflag [#allocation4], %s645
        %s647 = sand.u32 %s145, 1
        %s648 = scalar_lea.vmem [#allocation5], %s647
        // Predicated region
        $region45: #{tpu_custom_call.1} parent=39 // pred_check
          %p649 = pneg %p155
        $region46: #{tpu_custom_call.1} parent=39 // pred_check_branch
          %651 = sbr.rel (%p649) target = $region48
        $region47: #{tpu_custom_call.1} parent=39 // pred_region
          %s653 = ssub.s32 16, 16
          %654 = vsyncadd %s646, %s653
          %s655 = smul.addr %s22, 16
          %s656 = scalar_lea.hbm %s5, %s655
          %s658 = sshll.u32 %s648, 4
          %s659 = int_to_ptr.vmem [resolvable:$true] %s658
          %661 = dma.vmem_to_hbm [thread:$0]  %s659, 16, %s656, %s646
        $region48: #{tpu_custom_call.1} parent=39 // pred_fallthru
          _
      $region40: #{tpu_custom_call.1} parent=5 // pred_fallthru
        _
      %p662 = scmp.le.s32.totalorder 2, %s17
      // Predicated region
      $region49: #{tpu_custom_call.1} parent=5 // pred_check
        %p663 = pneg %p662
      $region50: #{tpu_custom_call.1} parent=5 // pred_check_branch
        %665 = sbr.rel (%p663) target = $region52
      $region51: #{tpu_custom_call.1} parent=5 // pred_region
        %s666 = ssub.s32 %s17, 2
        // Predicated region
        $region53: #{tpu_custom_call.1} parent=51 // pred_check
          %p667 = pneg %p161
        $region54: #{tpu_custom_call.1} parent=51 // pred_check_branch
          %669 = sbr.rel (%p667) target = $region56
        $region55: #{tpu_custom_call.1} parent=51 // pred_region
          %s670 = sand.u32 %s146, 1
          %s671 = scalar_lea.sflag [#allocation4], %s670
          %s672 = sand.u32 %s146, 1
          %s673 = scalar_lea.vmem [#allocation5], %s672
          %674 = dma.done %s671, 16
        $region56: #{tpu_custom_call.1} parent=51 // pred_fallthru
          _
      $region52: #{tpu_custom_call.1} parent=5 // pred_fallthru
        _
    $region6: #{tpu_custom_call.1} parent=1 // loop_footer
      %s21 = sadd.s32 1, %s17
    $region7: #{tpu_custom_call.1} parent=1 // loop_footer_branch
      %16 = sbr.rel target = $region3
    $region8: #{tpu_custom_call.1} parent=1 // loop_exit
      _
    %675 = vsyncpa [#allocation3], 1
    %s676 = scalar_lea.sflag [#allocation3], 1
    %677 = vsyncpa %s676, 1
    %678 = vsyncpa [#allocation4], 1
    %s679 = scalar_lea.sflag [#allocation4], 1
    %680 = vsyncpa %s679, 1

</llo_original>
